<compile_context>
chip_gen: v7x
topology: tpu7x:2x2x1
jax: 0.10.0
libtpu: 0.0.40
codegen_flags: <defaults>
</compile_context>

<pallas_src>
import functools

import jax
import jax.numpy as jnp
from jax import lax
from jax.experimental import pallas as pl
from jax.experimental.pallas import tpu as pltpu


# --------------------------- Fused attention kernel ----------------------------------
def _fused_attn_kernel(x_ref, wqkv_ref, wout_ref, b_ref, attn_ref, out_ref, yacc_ref,
                       *, heads, dim_head):
    # x_ref    : (1, N, D)            per-batch activations
    # wqkv_ref : (3*inner, D)         qkv projection weights (q rows pre-scaled), resident
    # wout_ref : (D, inner)           output projection weights (PyTorch layout), resident
    # b_ref    : (1, D)               output projection bias, resident
    # attn_ref : (1, H, N, N)         softmax weights for batch b
    # out_ref  : (1, N, D)            projected output for batch b
    # yacc_ref : (N, inner) f32 VMEM  per-head attention outputs, column slab per head
    inner = heads * dim_head
    contract_last = (((1,), (1,)), ((), ()))     # contract last dims, no transposes

    x = x_ref[0]                                 # (N, D)

    # One fused, lane-dense QKV projection: (N, D) x (D, 3*inner) -> (N, 3*inner).
    qkv = lax.dot_general(x, wqkv_ref[...], contract_last,
                          preferred_element_type=jnp.float32)

    # Static (fully unrolled) head loop: all indices are Python ints.
    for h in range(heads):
        lo = h * dim_head
        q = qkv[:, lo:lo + dim_head]                             # (N, Dh), scale folded in
        k = qkv[:, inner + lo:inner + lo + dim_head]             # (N, Dh)
        v = qkv[:, 2 * inner + lo:2 * inner + lo + dim_head]     # (N, Dh)

        dots = lax.dot_general(q, k, contract_last,
                               preferred_element_type=jnp.float32)   # (N, N)
        m = jnp.max(dots, axis=-1, keepdims=True)
        e = jnp.exp(dots - m)
        s = jnp.sum(e, axis=-1, keepdims=True)
        p = e * pl.reciprocal(s, approx=False)                       # softmax, f32
        attn_ref[0, h] = p.astype(attn_ref.dtype)

        # Head output into its column slab of the (N, inner) scratch.
        yacc_ref[:, lo:lo + dim_head] = jnp.dot(
            p, v, preferred_element_type=jnp.float32)                # (N, Dh)

    # One deep output projection: (N, inner) x (inner, D) + bias.
    out = lax.dot_general(yacc_ref[...], wout_ref[...], contract_last,
                          preferred_element_type=jnp.float32)        # (N, D)
    out_ref[0] = (out + b_ref[...]).astype(out_ref.dtype)


def attention_forward(x, params, heads):
    """Replicates Attention.forward (mask=None, dropout=0 / eval mode).

    Returns (attn, out):
      attn: (B, H, N, N) float32 softmax weights
      out : (B, N, dim)  projected output
    """
    b, n, dim = x.shape
    w_qkv, w_out, b_out = params["w_qkv"], params["w_out"], params["b_out"]
    inner_dim = w_qkv.shape[0] // 3
    dim_head = inner_dim // heads
    # NOTE: module intentionally scales by dim**-0.5 (not dim_head**-0.5).
    scale = float(dim) ** -0.5

    # Trace-time weight plumbing: fold softmax scale into the q rows of W_qkv.
    wqkv_scaled = w_qkv.at[:inner_dim].multiply(scale)    # (3*inner, D)
    b2 = b_out.reshape(1, dim)

    kernel = functools.partial(_fused_attn_kernel, heads=heads, dim_head=dim_head)

    attn, out = pl.pallas_call(
        kernel,
        out_shape=(
            jax.ShapeDtypeStruct((b, heads, n, n), jnp.float32),
            jax.ShapeDtypeStruct((b, n, dim), x.dtype),
        ),
        grid=(b,),
        in_specs=[
            pl.BlockSpec((1, n, dim), lambda i: (i, 0, 0)),               # x (per batch)
            pl.BlockSpec((3 * inner_dim, dim), lambda i: (0, 0)),         # W_qkv (resident)
            pl.BlockSpec((dim, inner_dim), lambda i: (0, 0)),             # W_out (resident)
            pl.BlockSpec((1, dim), lambda i: (0, 0)),                     # bias  (resident)
        ],
        out_specs=(
            pl.BlockSpec((1, heads, n, n), lambda i: (i, 0, 0, 0)),       # attn
            pl.BlockSpec((1, n, dim), lambda i: (i, 0, 0)),               # out
        ),
        scratch_shapes=[pltpu.VMEM((n, inner_dim), jnp.float32)],
        compiler_params=pltpu.CompilerParams(
            dimension_semantics=("parallel",),
        ),
    )(x, wqkv_scaled, w_out, b2)
    return attn, out


def init_params(key, dim, heads, dim_head):
    inner_dim = dim_head * heads
    k1, k2, k3 = jax.random.split(key, 3)
    # PyTorch nn.Linear weight layout: (out_features, in_features)
    w_qkv = jax.random.normal(k1, (inner_dim * 3, dim), jnp.float32) * 0.02
    w_out = jax.random.normal(k2, (dim, inner_dim), jnp.float32) * 0.02
    b_out = jax.random.normal(k3, (dim,), jnp.float32) * 0.02
    return {"w_qkv": w_qkv, "w_out": w_out, "b_out": b_out}


def _reference(x, params, heads):
    """Pure-JAX reference (mirrors the PyTorch module)."""
    b, n, dim = x.shape
    w_qkv, w_out, b_out = params["w_qkv"], params["w_out"], params["b_out"]
    inner_dim = w_qkv.shape[0] // 3
    dim_head = inner_dim // heads
    scale = float(dim) ** -0.5
    qkv = x @ w_qkv.T
    q, k, v = jnp.split(qkv, 3, axis=-1)
    sh = lambda t: t.reshape(b, n, heads, dim_head).transpose(0, 2, 1, 3)
    q, k, v = map(sh, (q, k, v))
    dots = jnp.einsum("bhid,bhjd->bhij", q, k) * scale
    attn = jax.nn.softmax(dots, axis=-1)
    out = jnp.einsum("bhij,bhjd->bhid", attn, v)
    out = out.transpose(0, 2, 1, 3).reshape(b, n, inner_dim)
    return attn, out @ w_out.T + b_out


if __name__ == "__main__":
    # Small shapes: batch=2, seq=8, dim=32, heads=4, dim_head=16 (inner_dim=64)
    B, N, DIM, HEADS, DIM_HEAD = 2, 8, 32, 4, 16

    key = jax.random.PRNGKey(0)
    kx, kp = jax.random.split(key)
    x = jax.random.normal(kx, (B, N, DIM), jnp.float32)
    params = init_params(kp, DIM, HEADS, DIM_HEAD)

    attn, out = attention_forward(x, params, HEADS)
    attn = jax.block_until_ready(attn)
    out = jax.block_until_ready(out)

    attn_ref, out_ref = _reference(x, params, HEADS)
    assert jnp.allclose(attn, attn_ref, atol=1e-5, rtol=1e-5)
    assert jnp.allclose(out, out_ref, atol=1e-5, rtol=1e-5)

    print("KERNEL_OK")
</pallas_src>

<mosaic_0001>
module attributes {stable_mosaic.version = 11 : i64} {
  func.func @_fused_attn_kernel(%arg0: i32, %arg1: memref<1x8x32xf32, #tpu.memory_space<vmem>>, %arg2: memref<192x32xf32, #tpu.memory_space<vmem>>, %arg3: memref<32x64xf32, #tpu.memory_space<vmem>>, %arg4: memref<1x32xf32, #tpu.memory_space<vmem>>, %arg5: memref<1x4x8x8xf32, #tpu.memory_space<vmem>>, %arg6: memref<1x8x32xf32, #tpu.memory_space<vmem>>, %arg7: memref<8x64xf32, #tpu.memory_space<vmem>>) attributes {dimension_semantics = [#tpu.dimension_semantics<parallel>], iteration_bounds = array<i64: 2>, scalar_prefetch = 0 : i64, scratch_operands = 1 : i64, tpu.core_type = #tpu.core_type<tc>, window_params = [{transform_indices = @transform_0, window_bounds = array<i64: 1, 8, 32>}, {pipeline_mode = #tpu.pipeline_mode<synchronous>, transform_indices = @transform_1, window_bounds = array<i64: 192, 32>}, {pipeline_mode = #tpu.pipeline_mode<synchronous>, transform_indices = @transform_2, window_bounds = array<i64: 32, 64>}, {pipeline_mode = #tpu.pipeline_mode<synchronous>, transform_indices = @transform_3, window_bounds = array<i64: 1, 32>}, {transform_indices = @transform_4, window_bounds = array<i64: 1, 4, 8, 8>}, {transform_indices = @transform_5, window_bounds = array<i64: 1, 8, 32>}]} {
    %c0 = arith.constant 0 : index
    %c0_0 = arith.constant 0 : index
    %c0_1 = arith.constant 0 : index
    %0 = vector.load %arg1[%c0, %c0_0, %c0_1] : memref<1x8x32xf32, #tpu.memory_space<vmem>>, vector<1x8x32xf32>
    %1 = vector.shape_cast %0 : vector<1x8x32xf32> to vector<8x32xf32>
    %c0_2 = arith.constant 0 : index
    %c0_3 = arith.constant 0 : index
    %2 = vector.load %arg2[%c0_2, %c0_3] : memref<192x32xf32, #tpu.memory_space<vmem>>, vector<192x32xf32>
    %cst = arith.constant dense<0.000000e+00> : vector<8x192xf32>
    %3 = tpu.matmul %1, %2, %cst {dimension_numbers = #tpu.dot_dimension_numbers<[1], [1], [0], [0], [0, 0, 1, 0], [], []>} : vector<8x32xf32>, vector<192x32xf32>, vector<8x192xf32> -> vector<8x192xf32>
    %4 = vector.extract_strided_slice %3 {offsets = [0, 0], sizes = [8, 16], strides = [1, 1]} : vector<8x192xf32> to vector<8x16xf32>
    %5 = vector.extract_strided_slice %3 {offsets = [0, 64], sizes = [8, 16], strides = [1, 1]} : vector<8x192xf32> to vector<8x16xf32>
    %6 = vector.extract_strided_slice %3 {offsets = [0, 128], sizes = [8, 16], strides = [1, 1]} : vector<8x192xf32> to vector<8x16xf32>
    %cst_4 = arith.constant dense<0.000000e+00> : vector<8x8xf32>
    %7 = tpu.matmul %4, %5, %cst_4 {dimension_numbers = #tpu.dot_dimension_numbers<[1], [1], [0], [0], [0, 0, 1, 0], [], []>} : vector<8x16xf32>, vector<8x16xf32>, vector<8x8xf32> -> vector<8x8xf32>
    %cst_5 = arith.constant dense<0xFF800000> : vector<8xf32>
    %8 = vector.multi_reduction <maximumf>, %7, %cst_5 [1] : vector<8x8xf32> to vector<8xf32>
    %9 = vector.shape_cast %8 : vector<8xf32> to vector<8x1xf32>
    %10 = vector.broadcast %9 : vector<8x1xf32> to vector<8x8xf32>
    %11 = arith.subf %7, %10 : vector<8x8xf32>
    %12 = math.exp %11 : vector<8x8xf32>
    %cst_6 = arith.constant dense<0.000000e+00> : vector<8xf32>
    %13 = vector.multi_reduction <add>, %12, %cst_6 [1] : vector<8x8xf32> to vector<8xf32>
    %14 = vector.shape_cast %13 : vector<8xf32> to vector<8x1xf32>
    %15 = tpu.reciprocal %14 : vector<8x1xf32> -> vector<8x1xf32>
    %16 = vector.broadcast %15 : vector<8x1xf32> to vector<8x8xf32>
    %17 = arith.mulf %12, %16 : vector<8x8xf32>
    %c0_7 = arith.constant 0 : index
    %c0_8 = arith.constant 0 : index
    %c0_9 = arith.constant 0 : index
    %c0_10 = arith.constant 0 : index
    %18 = vector.load %arg5[%c0_7, %c0_8, %c0_9, %c0_10] : memref<1x4x8x8xf32, #tpu.memory_space<vmem>>, vector<1x1x8x8xf32>
    %19 = vector.shape_cast %18 : vector<1x1x8x8xf32> to vector<8x8xf32>
    %20 = vector.shape_cast %17 : vector<8x8xf32> to vector<1x1x8x8xf32>
    tpu.vector_store %arg5[%c0_7, %c0_8, %c0_9, %c0_10], %20 {strides = array<i32>} : memref<1x4x8x8xf32, #tpu.memory_space<vmem>>, vector<1x1x8x8xf32>,
    %cst_11 = arith.constant dense<0.000000e+00> : vector<8x16xf32>
    %21 = tpu.matmul %17, %6, %cst_11 {dimension_numbers = #tpu.dot_dimension_numbers<[1], [0], [0], [1], [0, 0, 1, 1], [], []>} : vector<8x8xf32>, vector<8x16xf32>, vector<8x16xf32> -> vector<8x16xf32>
    %c0_12 = arith.constant 0 : index
    %c0_13 = arith.constant 0 : index
    %22 = vector.load %arg7[%c0_12, %c0_13] : memref<8x64xf32, #tpu.memory_space<vmem>>, vector<8x16xf32>
    tpu.vector_store %arg7[%c0_12, %c0_13], %21 {strides = array<i32>} : memref<8x64xf32, #tpu.memory_space<vmem>>, vector<8x16xf32>,
    %23 = vector.extract_strided_slice %3 {offsets = [0, 16], sizes = [8, 16], strides = [1, 1]} : vector<8x192xf32> to vector<8x16xf32>
    %24 = vector.extract_strided_slice %3 {offsets = [0, 80], sizes = [8, 16], strides = [1, 1]} : vector<8x192xf32> to vector<8x16xf32>
    %25 = vector.extract_strided_slice %3 {offsets = [0, 144], sizes = [8, 16], strides = [1, 1]} : vector<8x192xf32> to vector<8x16xf32>
    %cst_14 = arith.constant dense<0.000000e+00> : vector<8x8xf32>
    %26 = tpu.matmul %23, %24, %cst_14 {dimension_numbers = #tpu.dot_dimension_numbers<[1], [1], [0], [0], [0, 0, 1, 0], [], []>} : vector<8x16xf32>, vector<8x16xf32>, vector<8x8xf32> -> vector<8x8xf32>
    %cst_15 = arith.constant dense<0xFF800000> : vector<8xf32>
    %27 = vector.multi_reduction <maximumf>, %26, %cst_15 [1] : vector<8x8xf32> to vector<8xf32>
    %28 = vector.shape_cast %27 : vector<8xf32> to vector<8x1xf32>
    %29 = vector.broadcast %28 : vector<8x1xf32> to vector<8x8xf32>
    %30 = arith.subf %26, %29 : vector<8x8xf32>
    %31 = math.exp %30 : vector<8x8xf32>
    %cst_16 = arith.constant dense<0.000000e+00> : vector<8xf32>
    %32 = vector.multi_reduction <add>, %31, %cst_16 [1] : vector<8x8xf32> to vector<8xf32>
    %33 = vector.shape_cast %32 : vector<8xf32> to vector<8x1xf32>
    %34 = tpu.reciprocal %33 : vector<8x1xf32> -> vector<8x1xf32>
    %35 = vector.broadcast %34 : vector<8x1xf32> to vector<8x8xf32>
    %36 = arith.mulf %31, %35 : vector<8x8xf32>
    %c0_17 = arith.constant 0 : index
    %c1 = arith.constant 1 : index
    %c0_18 = arith.constant 0 : index
    %c0_19 = arith.constant 0 : index
    %37 = vector.load %arg5[%c0_17, %c1, %c0_18, %c0_19] : memref<1x4x8x8xf32, #tpu.memory_space<vmem>>, vector<1x1x8x8xf32>
    %38 = vector.shape_cast %37 : vector<1x1x8x8xf32> to vector<8x8xf32>
    %39 = vector.shape_cast %36 : vector<8x8xf32> to vector<1x1x8x8xf32>
    tpu.vector_store %arg5[%c0_17, %c1, %c0_18, %c0_19], %39 {strides = array<i32>} : memref<1x4x8x8xf32, #tpu.memory_space<vmem>>, vector<1x1x8x8xf32>,
    %cst_20 = arith.constant dense<0.000000e+00> : vector<8x16xf32>
    %40 = tpu.matmul %36, %25, %cst_20 {dimension_numbers = #tpu.dot_dimension_numbers<[1], [0], [0], [1], [0, 0, 1, 1], [], []>} : vector<8x8xf32>, vector<8x16xf32>, vector<8x16xf32> -> vector<8x16xf32>
    %c0_21 = arith.constant 0 : index
    %c16 = arith.constant 16 : index
    %41 = vector.load %arg7[%c0_21, %c16] : memref<8x64xf32, #tpu.memory_space<vmem>>, vector<8x16xf32>
    tpu.vector_store %arg7[%c0_21, %c16], %40 {strides = array<i32>} : memref<8x64xf32, #tpu.memory_space<vmem>>, vector<8x16xf32>,
    %42 = vector.extract_strided_slice %3 {offsets = [0, 32], sizes = [8, 16], strides = [1, 1]} : vector<8x192xf32> to vector<8x16xf32>
    %43 = vector.extract_strided_slice %3 {offsets = [0, 96], sizes = [8, 16], strides = [1, 1]} : vector<8x192xf32> to vector<8x16xf32>
    %44 = vector.extract_strided_slice %3 {offsets = [0, 160], sizes = [8, 16], strides = [1, 1]} : vector<8x192xf32> to vector<8x16xf32>
    %cst_22 = arith.constant dense<0.000000e+00> : vector<8x8xf32>
    %45 = tpu.matmul %42, %43, %cst_22 {dimension_numbers = #tpu.dot_dimension_numbers<[1], [1], [0], [0], [0, 0, 1, 0], [], []>} : vector<8x16xf32>, vector<8x16xf32>, vector<8x8xf32> -> vector<8x8xf32>
    %cst_23 = arith.constant dense<0xFF800000> : vector<8xf32>
    %46 = vector.multi_reduction <maximumf>, %45, %cst_23 [1] : vector<8x8xf32> to vector<8xf32>
    %47 = vector.shape_cast %46 : vector<8xf32> to vector<8x1xf32>
    %48 = vector.broadcast %47 : vector<8x1xf32> to vector<8x8xf32>
    %49 = arith.subf %45, %48 : vector<8x8xf32>
    %50 = math.exp %49 : vector<8x8xf32>
    %cst_24 = arith.constant dense<0.000000e+00> : vector<8xf32>
    %51 = vector.multi_reduction <add>, %50, %cst_24 [1] : vector<8x8xf32> to vector<8xf32>
    %52 = vector.shape_cast %51 : vector<8xf32> to vector<8x1xf32>
    %53 = tpu.reciprocal %52 : vector<8x1xf32> -> vector<8x1xf32>
    %54 = vector.broadcast %53 : vector<8x1xf32> to vector<8x8xf32>
    %55 = arith.mulf %50, %54 : vector<8x8xf32>
    %c0_25 = arith.constant 0 : index
    %c2 = arith.constant 2 : index
    %c0_26 = arith.constant 0 : index
    %c0_27 = arith.constant 0 : index
    %56 = vector.load %arg5[%c0_25, %c2, %c0_26, %c0_27] : memref<1x4x8x8xf32, #tpu.memory_space<vmem>>, vector<1x1x8x8xf32>
    %57 = vector.shape_cast %56 : vector<1x1x8x8xf32> to vector<8x8xf32>
    %58 = vector.shape_cast %55 : vector<8x8xf32> to vector<1x1x8x8xf32>
    tpu.vector_store %arg5[%c0_25, %c2, %c0_26, %c0_27], %58 {strides = array<i32>} : memref<1x4x8x8xf32, #tpu.memory_space<vmem>>, vector<1x1x8x8xf32>,
    %cst_28 = arith.constant dense<0.000000e+00> : vector<8x16xf32>
    %59 = tpu.matmul %55, %44, %cst_28 {dimension_numbers = #tpu.dot_dimension_numbers<[1], [0], [0], [1], [0, 0, 1, 1], [], []>} : vector<8x8xf32>, vector<8x16xf32>, vector<8x16xf32> -> vector<8x16xf32>
    %c0_29 = arith.constant 0 : index
    %c32 = arith.constant 32 : index
    %60 = vector.load %arg7[%c0_29, %c32] : memref<8x64xf32, #tpu.memory_space<vmem>>, vector<8x16xf32>
    tpu.vector_store %arg7[%c0_29, %c32], %59 {strides = array<i32>} : memref<8x64xf32, #tpu.memory_space<vmem>>, vector<8x16xf32>,
    %61 = vector.extract_strided_slice %3 {offsets = [0, 48], sizes = [8, 16], strides = [1, 1]} : vector<8x192xf32> to vector<8x16xf32>
    %62 = vector.extract_strided_slice %3 {offsets = [0, 112], sizes = [8, 16], strides = [1, 1]} : vector<8x192xf32> to vector<8x16xf32>
    %63 = vector.extract_strided_slice %3 {offsets = [0, 176], sizes = [8, 16], strides = [1, 1]} : vector<8x192xf32> to vector<8x16xf32>
    %cst_30 = arith.constant dense<0.000000e+00> : vector<8x8xf32>
    %64 = tpu.matmul %61, %62, %cst_30 {dimension_numbers = #tpu.dot_dimension_numbers<[1], [1], [0], [0], [0, 0, 1, 0], [], []>} : vector<8x16xf32>, vector<8x16xf32>, vector<8x8xf32> -> vector<8x8xf32>
    %cst_31 = arith.constant dense<0xFF800000> : vector<8xf32>
    %65 = vector.multi_reduction <maximumf>, %64, %cst_31 [1] : vector<8x8xf32> to vector<8xf32>
    %66 = vector.shape_cast %65 : vector<8xf32> to vector<8x1xf32>
    %67 = vector.broadcast %66 : vector<8x1xf32> to vector<8x8xf32>
    %68 = arith.subf %64, %67 : vector<8x8xf32>
    %69 = math.exp %68 : vector<8x8xf32>
    %cst_32 = arith.constant dense<0.000000e+00> : vector<8xf32>
    %70 = vector.multi_reduction <add>, %69, %cst_32 [1] : vector<8x8xf32> to vector<8xf32>
    %71 = vector.shape_cast %70 : vector<8xf32> to vector<8x1xf32>
    %72 = tpu.reciprocal %71 : vector<8x1xf32> -> vector<8x1xf32>
    %73 = vector.broadcast %72 : vector<8x1xf32> to vector<8x8xf32>
    %74 = arith.mulf %69, %73 : vector<8x8xf32>
    %c0_33 = arith.constant 0 : index
    %c3 = arith.constant 3 : index
    %c0_34 = arith.constant 0 : index
    %c0_35 = arith.constant 0 : index
    %75 = vector.load %arg5[%c0_33, %c3, %c0_34, %c0_35] : memref<1x4x8x8xf32, #tpu.memory_space<vmem>>, vector<1x1x8x8xf32>
    %76 = vector.shape_cast %75 : vector<1x1x8x8xf32> to vector<8x8xf32>
    %77 = vector.shape_cast %74 : vector<8x8xf32> to vector<1x1x8x8xf32>
    tpu.vector_store %arg5[%c0_33, %c3, %c0_34, %c0_35], %77 {strides = array<i32>} : memref<1x4x8x8xf32, #tpu.memory_space<vmem>>, vector<1x1x8x8xf32>,
    %cst_36 = arith.constant dense<0.000000e+00> : vector<8x16xf32>
    %78 = tpu.matmul %74, %63, %cst_36 {dimension_numbers = #tpu.dot_dimension_numbers<[1], [0], [0], [1], [0, 0, 1, 1], [], []>} : vector<8x8xf32>, vector<8x16xf32>, vector<8x16xf32> -> vector<8x16xf32>
    %c0_37 = arith.constant 0 : index
    %c48 = arith.constant 48 : index
    %79 = vector.load %arg7[%c0_37, %c48] : memref<8x64xf32, #tpu.memory_space<vmem>>, vector<8x16xf32>
    tpu.vector_store %arg7[%c0_37, %c48], %78 {strides = array<i32>} : memref<8x64xf32, #tpu.memory_space<vmem>>, vector<8x16xf32>,
    %c0_38 = arith.constant 0 : index
    %c0_39 = arith.constant 0 : index
    %80 = vector.load %arg7[%c0_38, %c0_39] : memref<8x64xf32, #tpu.memory_space<vmem>>, vector<8x64xf32>
    %c0_40 = arith.constant 0 : index
    %c0_41 = arith.constant 0 : index
    %81 = vector.load %arg3[%c0_40, %c0_41] : memref<32x64xf32, #tpu.memory_space<vmem>>, vector<32x64xf32>
    %cst_42 = arith.constant dense<0.000000e+00> : vector<8x32xf32>
    %82 = tpu.matmul %80, %81, %cst_42 {dimension_numbers = #tpu.dot_dimension_numbers<[1], [1], [0], [0], [0, 0, 1, 0], [], []>} : vector<8x64xf32>, vector<32x64xf32>, vector<8x32xf32> -> vector<8x32xf32>
    %c0_43 = arith.constant 0 : index
    %c0_44 = arith.constant 0 : index
    %83 = vector.load %arg4[%c0_43, %c0_44] : memref<1x32xf32, #tpu.memory_space<vmem>>, vector<1x32xf32>
    %84 = vector.broadcast %83 : vector<1x32xf32> to vector<8x32xf32>
    %85 = arith.addf %82, %84 : vector<8x32xf32>
    %c0_45 = arith.constant 0 : index
    %c0_46 = arith.constant 0 : index
    %c0_47 = arith.constant 0 : index
    %86 = vector.load %arg6[%c0_45, %c0_46, %c0_47] : memref<1x8x32xf32, #tpu.memory_space<vmem>>, vector<1x8x32xf32>
    %87 = vector.shape_cast %86 : vector<1x8x32xf32> to vector<8x32xf32>
    %88 = vector.shape_cast %85 : vector<8x32xf32> to vector<1x8x32xf32>
    tpu.vector_store %arg6[%c0_45, %c0_46, %c0_47], %88 {strides = array<i32>} : memref<1x8x32xf32, #tpu.memory_space<vmem>>, vector<1x8x32xf32>,
    return
  }
  func.func @transform_0(%arg0: i32) -> (i32, i32, i32) {
    %c0_i32 = arith.constant 0 : i32
    %c0_i32_0 = arith.constant 0 : i32
    %c0_i32_1 = arith.constant 0 : i32
    return %arg0, %c0_i32, %c0_i32_0 : i32, i32, i32
  }
  func.func @transform_1(%arg0: i32) -> (i32, i32) {
    %c0_i32 = arith.constant 0 : i32
    %c0_i32_0 = arith.constant 0 : i32
    %c0_i32_1 = arith.constant 0 : i32
    return %c0_i32, %c0_i32_0 : i32, i32
  }
  func.func @transform_2(%arg0: i32) -> (i32, i32) {
    %c0_i32 = arith.constant 0 : i32
    %c0_i32_0 = arith.constant 0 : i32
    %c0_i32_1 = arith.constant 0 : i32
    return %c0_i32, %c0_i32_0 : i32, i32
  }
  func.func @transform_3(%arg0: i32) -> (i32, i32) {
    %c0_i32 = arith.constant 0 : i32
    %c0_i32_0 = arith.constant 0 : i32
    %c0_i32_1 = arith.constant 0 : i32
    return %c0_i32, %c0_i32_0 : i32, i32
  }
  func.func @transform_4(%arg0: i32) -> (i32, i32, i32, i32) {
    %c0_i32 = arith.constant 0 : i32
    %c0_i32_0 = arith.constant 0 : i32
    %c0_i32_1 = arith.constant 0 : i32
    %c0_i32_2 = arith.constant 0 : i32
    return %arg0, %c0_i32, %c0_i32_0, %c0_i32_1 : i32, i32, i32, i32
  }
  func.func @transform_5(%arg0: i32) -> (i32, i32, i32) {
    %c0_i32 = arith.constant 0 : i32
    %c0_i32_0 = arith.constant 0 : i32
    %c0_i32_1 = arith.constant 0 : i32
    return %arg0, %c0_i32, %c0_i32_0 : i32, i32, i32
  }
}

</mosaic_0001>

<llo_original>
// kernel: tpu_custom_call.1
$region0: #{tpu_custom_call.1}
  #allocation0 [shape = 'u32[]', space=smem, size = 0x4, offset = 0x4, fixed_abs, tag = 'smem constant byte address 0x4 - core index']
  #allocation1 [shape = 'u32[144,128]{1,0:T(1,128)}', space=vmem, size = 0x12000, scoped, tag = 'internal scratch']
  #allocation2 [shape = 'f32[8,64]{1,0:T(8,128)}', space=vmem, size = 0x1000, scoped, tag = 'scratch operand']
  %s0 = inlined_call_operand.vmem [shape: f32[2,8,32], index: 0, kind: input, shape index: {}]
  %s1 = inlined_call_operand.vmem [shape: f32[192,32], index: 1, kind: input, shape index: {}]
  %s2 = inlined_call_operand.vmem [shape: f32[32,64], index: 2, kind: input, shape index: {}]
  %s3 = inlined_call_operand.vmem [shape: f32[1,32], index: 3, kind: input, shape index: {}]
  %s4 = inlined_call_operand.hbm [shape: f32[2,4,8,8], index: 4, kind: output, shape index: {0}]
  %s5 = inlined_call_operand.hbm [shape: f32[2,8,32], index: 5, kind: output, shape index: {1}]
  %6 = xla_tuple %s4, %s5
  %s7 = sld [smem:[#allocation0]]
  $region57: #{tpu_custom_call.1} parent=0
    _
  %s9 = ssub.s32 1, %s7
  %s10 = scalar_select 0, %s9, %s7
  $region1: #{tpu_custom_call.1} parent=0
    #allocation3 [shape = 'u8[32768]{0}', space=vmem, size = 0x8000, scoped, tag = 'output window, operand 0']
    #allocation4 [shape = 's32[2]{0}', space=sflag, size = 0x8, scoped, tag = 'scoped memory for tpu_custom_call.1']
    #allocation5 [shape = 'u8[8192]{0}', space=vmem, size = 0x2000, scoped, tag = 'output window, operand 1']
    #allocation6 [shape = 's32[2]{0}', space=sflag, size = 0x8, scoped, tag = 'scoped memory for tpu_custom_call.1']
    %11 = vsyncpa [#allocation4], 0
    %s12 = scalar_lea.sflag [#allocation4], 1
    %13 = vsyncpa %s12, 0
    %14 = vsyncpa [#allocation6], 0
    %s15 = scalar_lea.sflag [#allocation6], 1
    %16 = vsyncpa %s15, 0
    loop: start=0, step=1, limit=4
    $region2: #{tpu_custom_call.1} parent=1 // loop_pre_header
      _
    $region3: #{tpu_custom_call.1} parent=1 // loop_header
      %s18 = sphi 0, %s22
      %p19 = scmp.ge.s32.totalorder %s18, 4
      %s28 = sphi 0, %s30
      %s31 = sphi 0, %s28
      %s32 = sphi 0, %s31
      %s48 = sphi 0, %s32
      %s52 = sphi 0, %s52
      %s54 = sphi 0, %s52
      %s55 = sphi 0, %s54
      %s69 = sphi 0, %s55
      %s73 = sphi 0, %s73
      %s75 = sphi 0, %s73
      %s76 = sphi 0, %s75
      %s90 = sphi 0, %s76
      %s94 = sphi 0, %s94
      %s96 = sphi 0, %s94
      %s97 = sphi 0, %s96
      %s111 = sphi 0, %s97
      %s117 = sphi 0, %s119
      %s120 = sphi 0, %s117
      %s121 = sphi 0, %s120
      %s137 = sphi 0, %s121
      %s143 = sphi 0, %s145
      %s146 = sphi 0, %s143
      %s147 = sphi 0, %s146
      %s163 = sphi 0, %s147
    $region4: #{tpu_custom_call.1} parent=1 // loop_header_branch
      %21 = sbr.rel (%p19) target = $region8
    $region5: #{tpu_custom_call.1} parent=1 // loop_body
      %s23 = ssub.s32 %s18, 1
      %s24 = ssub.s32 %s18, 2
      %s25 = sadd.s32 %s18, 1
      %s26 = ssub.s32 %s18, %s25
      %p27 = scmp.eq.s32.totalorder %s26, 0
      %s29 = sadd.s32 %s28, 1
      %s30 = scalar_select %p27, %s28, %s29
      %p33 = pneg %p27
      %p34 = scmp.eq.s32.totalorder %s18, 1
      %p35 = por %p33, %p34
      %p36 = scmp.ne.s32.totalorder %s28, %s31
      %p37 = scmp.eq.s32.totalorder %s18, 0
      %p38 = por %p36, %p37
      %p39 = scmp.ne.s32.totalorder %s28, %s31
      %p40 = scmp.eq.s32.totalorder %s23, 1
      %p41 = por %p39, %p40
      %p42 = scmp.ne.s32.totalorder %s31, %s32
      %p43 = scmp.eq.s32.totalorder %s23, 0
      %p44 = por %p42, %p43
      %p45 = scmp.ne.s32.totalorder %s31, %s32
      %p46 = scmp.eq.s32.totalorder %s24, 1
      %p47 = por %p45, %p46
      %p49 = scmp.ne.s32.totalorder %s32, %s48
      %p50 = scmp.eq.s32.totalorder %s24, 0
      %p51 = por %p49, %p50
      %s53 = sadd.s32 %s52, 1
      %p56 = scmp.eq.s32.totalorder %s18, 1
      %p57 = scmp.ne.s32.totalorder %s52, %s54
      %p58 = scmp.eq.s32.totalorder %s18, 0
      %p59 = por %p57, %p58
      %p60 = scmp.ne.s32.totalorder %s52, %s54
      %p61 = scmp.eq.s32.totalorder %s23, 1
      %p62 = por %p60, %p61
      %p63 = scmp.ne.s32.totalorder %s54, %s55
      %p64 = scmp.eq.s32.totalorder %s23, 0
      %p65 = por %p63, %p64
      %p66 = scmp.ne.s32.totalorder %s54, %s55
      %p67 = scmp.eq.s32.totalorder %s24, 1
      %p68 = por %p66, %p67
      %p70 = scmp.ne.s32.totalorder %s55, %s69
      %p71 = scmp.eq.s32.totalorder %s24, 0
      %p72 = por %p70, %p71
      %s74 = sadd.s32 %s73, 1
      %p77 = scmp.eq.s32.totalorder %s18, 1
      %p78 = scmp.ne.s32.totalorder %s73, %s75
      %p79 = scmp.eq.s32.totalorder %s18, 0
      %p80 = por %p78, %p79
      %p81 = scmp.ne.s32.totalorder %s73, %s75
      %p82 = scmp.eq.s32.totalorder %s23, 1
      %p83 = por %p81, %p82
      %p84 = scmp.ne.s32.totalorder %s75, %s76
      %p85 = scmp.eq.s32.totalorder %s23, 0
      %p86 = por %p84, %p85
      %p87 = scmp.ne.s32.totalorder %s75, %s76
      %p88 = scmp.eq.s32.totalorder %s24, 1
      %p89 = por %p87, %p88
      %p91 = scmp.ne.s32.totalorder %s76, %s90
      %p92 = scmp.eq.s32.totalorder %s24, 0
      %p93 = por %p91, %p92
      %s95 = sadd.s32 %s94, 1
      %p98 = scmp.eq.s32.totalorder %s18, 1
      %p99 = scmp.ne.s32.totalorder %s94, %s96
      %p100 = scmp.eq.s32.totalorder %s18, 0
      %p101 = por %p99, %p100
      %p102 = scmp.ne.s32.totalorder %s94, %s96
      %p103 = scmp.eq.s32.totalorder %s23, 1
      %p104 = por %p102, %p103
      %p105 = scmp.ne.s32.totalorder %s96, %s97
      %p106 = scmp.eq.s32.totalorder %s23, 0
      %p107 = por %p105, %p106
      %p108 = scmp.ne.s32.totalorder %s96, %s97
      %p109 = scmp.eq.s32.totalorder %s24, 1
      %p110 = por %p108, %p109
      %p112 = scmp.ne.s32.totalorder %s97, %s111
      %p113 = scmp.eq.s32.totalorder %s24, 0
      %p114 = por %p112, %p113
      %s115 = ssub.s32 %s18, %s25
      %p116 = scmp.eq.s32.totalorder %s115, 0
      %s118 = sadd.s32 %s117, 1
      %s119 = scalar_select %p116, %s117, %s118
      %p122 = pneg %p116
      %p123 = scmp.eq.s32.totalorder %s18, 1
      %p124 = por %p122, %p123
      %p125 = scmp.ne.s32.totalorder %s117, %s120
      %p126 = scmp.eq.s32.totalorder %s18, 0
      %p127 = por %p125, %p126
      %p128 = scmp.ne.s32.totalorder %s117, %s120
      %p129 = scmp.eq.s32.totalorder %s23, 1
      %p130 = por %p128, %p129
      %p131 = scmp.ne.s32.totalorder %s120, %s121
      %p132 = scmp.eq.s32.totalorder %s23, 0
      %p133 = por %p131, %p132
      %p134 = scmp.ne.s32.totalorder %s120, %s121
      %p135 = scmp.eq.s32.totalorder %s24, 1
      %p136 = por %p134, %p135
      %p138 = scmp.ne.s32.totalorder %s121, %s137
      %p139 = scmp.eq.s32.totalorder %s24, 0
      %p140 = por %p138, %p139
      %s141 = ssub.s32 %s18, %s25
      %p142 = scmp.eq.s32.totalorder %s141, 0
      %s144 = sadd.s32 %s143, 1
      %s145 = scalar_select %p142, %s143, %s144
      %p148 = pneg %p142
      %p149 = scmp.eq.s32.totalorder %s18, 1
      %p150 = por %p148, %p149
      %p151 = scmp.ne.s32.totalorder %s143, %s146
      %p152 = scmp.eq.s32.totalorder %s18, 0
      %p153 = por %p151, %p152
      %p154 = scmp.ne.s32.totalorder %s143, %s146
      %p155 = scmp.eq.s32.totalorder %s23, 1
      %p156 = por %p154, %p155
      %p157 = scmp.ne.s32.totalorder %s146, %s147
      %p158 = scmp.eq.s32.totalorder %s23, 0
      %p159 = por %p157, %p158
      %p160 = scmp.ne.s32.totalorder %s146, %s147
      %p161 = scmp.eq.s32.totalorder %s24, 1
      %p162 = por %p160, %p161
      %p164 = scmp.ne.s32.totalorder %s147, %s163
      %p165 = scmp.eq.s32.totalorder %s24, 0
      %p166 = por %p164, %p165
      %p167 = scmp.le.s32.totalorder 1, %s18
      %p168 = scmp.lt.s32.totalorder %s18, 3
      %p169 = pnand %p167, %p168
      %p170 = pneg %p169
      // Predicated region
      $region9: #{tpu_custom_call.1} parent=5 // pred_check
        _
      $region10: #{tpu_custom_call.1} parent=5 // pred_check_branch
        %172 = sbr.rel (%p169) target = $region12
      $region11: #{tpu_custom_call.1} parent=5 // pred_region
        %s173 = ssub.s32 %s18, 1
        // Predicated region
        $region13: #{tpu_custom_call.1} parent=11 // pred_check
          %p174 = pneg %p65
        $region14: #{tpu_custom_call.1} parent=11 // pred_check_branch
          %176 = sbr.rel (%p174) target = $region16
        $region15: #{tpu_custom_call.1} parent=11 // pred_region
          _
        $region16: #{tpu_custom_call.1} parent=11 // pred_fallthru
          _
        // Predicated region
        $region17: #{tpu_custom_call.1} parent=11 // pred_check
          %p177 = pneg %p86
        $region18: #{tpu_custom_call.1} parent=11 // pred_check_branch
          %179 = sbr.rel (%p177) target = $region20
        $region19: #{tpu_custom_call.1} parent=11 // pred_region
          _
        $region20: #{tpu_custom_call.1} parent=11 // pred_fallthru
          _
        // Predicated region
        $region21: #{tpu_custom_call.1} parent=11 // pred_check
          %p180 = pneg %p107
        $region22: #{tpu_custom_call.1} parent=11 // pred_check_branch
          %182 = sbr.rel (%p180) target = $region24
        $region23: #{tpu_custom_call.1} parent=11 // pred_region
          _
        $region24: #{tpu_custom_call.1} parent=11 // pred_fallthru
          _
      $region12: #{tpu_custom_call.1} parent=5 // pred_fallthru
        _
      %p183 = scmp.lt.s32.totalorder %s18, 2
      // Predicated region
      $region25: #{tpu_custom_call.1} parent=5 // pred_check
        %p184 = pneg %p183
      $region26: #{tpu_custom_call.1} parent=5 // pred_check_branch
        %186 = sbr.rel (%p184) target = $region28
      $region27: #{tpu_custom_call.1} parent=5 // pred_region
        // Predicated region
        $region29: #{tpu_custom_call.1} parent=27 // pred_check
          %p187 = pneg %p38
        $region30: #{tpu_custom_call.1} parent=27 // pred_check_branch
          %189 = sbr.rel (%p187) target = $region32
        $region31: #{tpu_custom_call.1} parent=27 // pred_region
          %p190 = scmp.lt.s32.totalorder %s18, 1
          %s191 = scalar_select %p190, %s18, 1
          %s192 = smul.addr %s191, 8
          %s193 = scalar_lea.vmem %s0, %s192
        $region32: #{tpu_custom_call.1} parent=27 // pred_fallthru
          _
      $region28: #{tpu_custom_call.1} parent=5 // pred_fallthru
        _
      %p194 = scmp.le.s32.totalorder 1, %s18
      %p195 = scmp.lt.s32.totalorder %s18, 3
      %p196 = pnand %p194, %p195
      %p197 = pneg %p196
      // Predicated region
      $region33: #{tpu_custom_call.1} parent=5 // pred_check
        _
      $region34: #{tpu_custom_call.1} parent=5 // pred_check_branch
        %199 = sbr.rel (%p196) target = $region36
      $region35: #{tpu_custom_call.1} parent=5 // pred_region
        %s200 = ssub.s32 %s18, 1
        %p201 = scmp.lt.s32.totalorder %s23, 1
        %s202 = scalar_select %p201, %s23, 1
        %s203 = smul.addr %s202, 8
        %s204 = scalar_lea.vmem %s0, %s203
        %p205 = pneg %p44
        %p206 = pneg %p41
        %p207 = pneg %p65
        %p208 = pneg %p62
        %p209 = pneg %p86
        %p210 = pneg %p83
        %p211 = pneg %p107
        %p212 = pneg %p104
        %p213 = pneg %p133
        %p214 = pneg %p130
        %s215 = sand.u32 %s120, 1
        %s216 = scalar_lea.sflag [#allocation4], %s215
        %s217 = sand.u32 %s120, 1
        %s218 = smul.addr %s217, 32
        %s219 = scalar_lea.vmem [#allocation3], %s218
        %p220 = pneg %p159
        %p221 = pneg %p156
        %s222 = sand.u32 %s146, 1
        %s223 = scalar_lea.sflag [#allocation6], %s222
        %s224 = sand.u32 %s146, 1
        %s225 = smul.addr %s224, 8
        %s226 = scalar_lea.vmem [#allocation5], %s225
        %p227 = scmp.lt.s32.totalorder %s23, 1
        %s228 = scalar_select %p227, %s23, 1
        %s229 = smul.addr %s228, 8
        %s230 = scalar_lea.vmem %s0, %s229
        %v231 = vld [vmem:[%s230] sm:$0xff]
        %v232 = vld [vmem:[%s1] sm:$0xff]
        %v233 = vld [vmem:[%s1 + $0x8] sm:$0xff]
        %v234 = vld [vmem:[%s1 + $0x10] sm:$0xff]
        %v235 = vld [vmem:[%s1 + $0x18] sm:$0xff]
        %v236 = vld [vmem:[%s1 + $0x20] sm:$0xff]
        %v237 = vld [vmem:[%s1 + $0x28] sm:$0xff]
        %v238 = vld [vmem:[%s1 + $0x30] sm:$0xff]
        %v239 = vld [vmem:[%s1 + $0x38] sm:$0xff]
        %v240 = vld [vmem:[%s1 + $0x40] sm:$0xff]
        %v241 = vld [vmem:[%s1 + $0x48] sm:$0xff]
        %v242 = vld [vmem:[%s1 + $0x50] sm:$0xff]
        %v243 = vld [vmem:[%s1 + $0x58] sm:$0xff]
        %v244 = vld [vmem:[%s1 + $0x60] sm:$0xff]
        %v245 = vld [vmem:[%s1 + $0x68] sm:$0xff]
        %v246 = vld [vmem:[%s1 + $0x70] sm:$0xff]
        %v247 = vld [vmem:[%s1 + $0x78] sm:$0xff]
        %v248 = vld [vmem:[%s1 + $0x80] sm:$0xff]
        %v249 = vld [vmem:[%s1 + $0x88] sm:$0xff]
        %v250 = vld [vmem:[%s1 + $0x90] sm:$0xff]
        %v251 = vld [vmem:[%s1 + $0x98] sm:$0xff]
        %v252 = vld [vmem:[%s1 + $0xa0] sm:$0xff]
        %v253 = vld [vmem:[%s1 + $0xa8] sm:$0xff]
        %v254 = vld [vmem:[%s1 + $0xb0] sm:$0xff]
        %v255 = vld [vmem:[%s1 + $0xb8] sm:$0xff]
        %vm256 = vcmask 261120
        %v258 = vsel %vm256, %v231, 0
        %v261 = vsel %vm256, %v232, 0
        %v264 = vsel %vm256, %v233, 0
        %v267 = vsel %vm256, %v234, 0
        %v270 = vsel %vm256, %v235, 0
        %v273 = vsel %vm256, %v236, 0
        %v276 = vsel %vm256, %v237, 0
        %v279 = vsel %vm256, %v238, 0
        %v282 = vsel %vm256, %v239, 0
        %v285 = vsel %vm256, %v240, 0
        %v288 = vsel %vm256, %v241, 0
        %v291 = vsel %vm256, %v242, 0
        %v294 = vsel %vm256, %v243, 0
        %v297 = vsel %vm256, %v244, 0
        %v300 = vsel %vm256, %v245, 0
        %v303 = vsel %vm256, %v246, 0
        %v306 = vsel %vm256, %v247, 0
        %v309 = vsel %vm256, %v248, 0
        %v312 = vsel %vm256, %v249, 0
        %v315 = vsel %vm256, %v250, 0
        %v318 = vsel %vm256, %v251, 0
        %v321 = vsel %vm256, %v252, 0
        %v324 = vsel %vm256, %v253, 0
        %v327 = vsel %vm256, %v254, 0
        %v330 = vsel %vm256, %v255, 0
        %332 = vmatprep.subr.mxu0 0.0
        %333 = vmatpush1.xpose.msra.mxu0 %v261
        %334 = vmatprep.subr.mxu0 0.0
        %335 = vmatpush1.xpose.msra.mxu0 %v264
        %336 = vmatprep.subr.mxu0 0.0
        %337 = vmatpush1.xpose.msra.mxu0 %v267
        %338 = vmatprep.subr.mxu0 0.0
        %339 = vmatpush1.xpose.msra.mxu0 %v270
        %340 = vmatprep.subr.mxu0 0.0
        %341 = vmatpush1.xpose.msra.mxu0 %v273
        %342 = vmatprep.subr.mxu0 0.0
        %343 = vmatpush1.xpose.msra.mxu0 %v276
        %344 = vmatprep.subr.mxu0 0.0
        %345 = vmatpush1.xpose.msra.mxu0 %v279
        %346 = vmatprep.subr.mxu0 0.0
        %347 = vmatpush1.xpose.msra.mxu0 %v282
        %348 = vmatprep.subr.mxu0 0.0
        %349 = vmatpush1.xpose.msra.mxu0 %v285
        %350 = vmatprep.subr.mxu0 0.0
        %351 = vmatpush1.xpose.msra.mxu0 %v288
        %352 = vmatprep.subr.mxu0 0.0
        %353 = vmatpush1.xpose.msra.mxu0 %v291
        %354 = vmatprep.subr.mxu0 0.0
        %355 = vmatpush1.xpose.msra.mxu0 %v294
        %356 = vmatprep.subr.mxu0 0.0
        %357 = vmatpush1.xpose.msra.mxu0 %v297
        %358 = vmatprep.subr.mxu0 0.0
        %359 = vmatpush1.xpose.msra.mxu0 %v300
        %360 = vmatprep.subr.mxu0 0.0
        %361 = vmatpush1.xpose.msra.mxu0 %v303
        %362 = vmatprep.subr.mxu0 0.0
        %363 = vmatpush1.xpose.msra.mxu0 %v306
        %364 = vmatprep.subr.mxu0 0.0
        %365 = vmatpush1.xpose.msra.mxu0 %v309
        %366 = vmatprep.subr.mxu0 0.0
        %367 = vmatpush1.xpose.msra.mxu0 %v312
        %368 = vmatprep.subr.mxu0 0.0
        %369 = vmatpush1.xpose.msra.mxu0 %v315
        %370 = vmatprep.subr.mxu0 0.0
        %371 = vmatpush1.xpose.msra.mxu0 %v318
        %372 = vmatprep.subr.mxu0 0.0
        %373 = vmatpush1.xpose.msra.mxu0 %v321
        %374 = vmatprep.subr.mxu0 0.0
        %375 = vmatpush1.xpose.msra.mxu0 %v324
        %376 = vmatprep.subr.mxu0 0.0
        %377 = vmatpush1.xpose.msra.mxu0 %v327
        %378 = vmatprep.subr.mxu0 0.0
        %379 = vmatpush1.xpose.msra.mxu0 %v330
        %380 = vmatprep.subr.mxu0 0.0
        %381 = vmatpush1.xpose.msra.mxu0 0.0
        %382 = vmatprep.subr.mxu0 0.0
        %383 = vmatpush1.xpose.msra.mxu0 0.0
        %384 = vmatprep.subr.mxu0 0.0
        %385 = vmatpush1.xpose.msra.mxu0 0.0
        %386 = vmatprep.subr.mxu0 0.0
        %387 = vmatpush1.xpose.msra.mxu0 0.0
        %388 = vmatprep.subr.mxu0 0.0
        %389 = vmatpush1.xpose.msra.mxu0 0.0
        %390 = vmatprep.subr.mxu0 0.0
        %391 = vmatpush1.xpose.msra.mxu0 0.0
        %392 = vmatprep.subr.mxu0 0.0
        %393 = vmatpush1.xpose.msra.mxu0 0.0
        %394 = vmatprep.subr.mxu0 0.0
        %395 = vmatpush1.xpose.msra.mxu0 0.0
        %396 = vmatprep.mubr.f32.mxu0 0.0
        %397 = vmatmul.mubr.f32.gmra.mrb[0].mxu0 %v258
        %v398 = vpop.f32.mrb[0].mxu0
        %v399 = vadd.f32 0.0, %v398
        %v400 = vpop.f32.mrb[0].mxu0
        %v401 = vadd.f32 0.0, %v400
        %402 = vdwg.mxu0
        %404 = vrot.lane.b32.xlu0 %v399, 64
        %v405 = vpop.permute.xlu0 %404
        %vm406 = vcmask 130048
        %v407 = vsel %vm406, %v399, 0
        %v409 = vsel %vm406, %v405, 0
        %411 = vmatprep.subr.mxu0 0.0
        %412 = vmatpush1.xpose.msra.mxu0 %v409
        %413 = vmatprep.subr.mxu0 0.0
        %414 = vmatpush1.xpose.msra.mxu0 0.0
        %415 = vmatprep.subr.mxu0 0.0
        %416 = vmatpush1.xpose.msra.mxu0 0.0
        %417 = vmatprep.subr.mxu0 0.0
        %418 = vmatpush1.xpose.msra.mxu0 0.0
        %419 = vmatprep.subr.mxu0 0.0
        %420 = vmatpush1.xpose.msra.mxu0 0.0
        %421 = vmatprep.subr.mxu0 0.0
        %422 = vmatpush1.xpose.msra.mxu0 0.0
        %423 = vmatprep.subr.mxu0 0.0
        %424 = vmatpush1.xpose.msra.mxu0 0.0
        %425 = vmatprep.subr.mxu0 0.0
        %426 = vmatpush1.xpose.msra.mxu0 0.0
        %427 = vmatprep.subr.mxu0 0.0
        %428 = vmatpush1.xpose.msra.mxu0 0.0
        %429 = vmatprep.subr.mxu0 0.0
        %430 = vmatpush1.xpose.msra.mxu0 0.0
        %431 = vmatprep.subr.mxu0 0.0
        %432 = vmatpush1.xpose.msra.mxu0 0.0
        %433 = vmatprep.subr.mxu0 0.0
        %434 = vmatpush1.xpose.msra.mxu0 0.0
        %435 = vmatprep.subr.mxu0 0.0
        %436 = vmatpush1.xpose.msra.mxu0 0.0
        %437 = vmatprep.subr.mxu0 0.0
        %438 = vmatpush1.xpose.msra.mxu0 0.0
        %439 = vmatprep.subr.mxu0 0.0
        %440 = vmatpush1.xpose.msra.mxu0 0.0
        %441 = vmatprep.subr.mxu0 0.0
        %442 = vmatpush1.xpose.msra.mxu0 0.0
        %443 = vmatprep.subr.mxu0 0.0
        %444 = vmatpush1.xpose.msra.mxu0 0.0
        %445 = vmatprep.subr.mxu0 0.0
        %446 = vmatpush1.xpose.msra.mxu0 0.0
        %447 = vmatprep.subr.mxu0 0.0
        %448 = vmatpush1.xpose.msra.mxu0 0.0
        %449 = vmatprep.subr.mxu0 0.0
        %450 = vmatpush1.xpose.msra.mxu0 0.0
        %451 = vmatprep.subr.mxu0 0.0
        %452 = vmatpush1.xpose.msra.mxu0 0.0
        %453 = vmatprep.subr.mxu0 0.0
        %454 = vmatpush1.xpose.msra.mxu0 0.0
        %455 = vmatprep.subr.mxu0 0.0
        %456 = vmatpush1.xpose.msra.mxu0 0.0
        %457 = vmatprep.subr.mxu0 0.0
        %458 = vmatpush1.xpose.msra.mxu0 0.0
        %459 = vmatprep.subr.mxu0 0.0
        %460 = vmatpush1.xpose.msra.mxu0 0.0
        %461 = vmatprep.subr.mxu0 0.0
        %462 = vmatpush1.xpose.msra.mxu0 0.0
        %463 = vmatprep.subr.mxu0 0.0
        %464 = vmatpush1.xpose.msra.mxu0 0.0
        %465 = vmatprep.subr.mxu0 0.0
        %466 = vmatpush1.xpose.msra.mxu0 0.0
        %467 = vmatprep.subr.mxu0 0.0
        %468 = vmatpush1.xpose.msra.mxu0 0.0
        %469 = vmatprep.subr.mxu0 0.0
        %470 = vmatpush1.xpose.msra.mxu0 0.0
        %471 = vmatprep.subr.mxu0 0.0
        %472 = vmatpush1.xpose.msra.mxu0 0.0
        %473 = vmatprep.subr.mxu0 0.0
        %474 = vmatpush1.xpose.msra.mxu0 0.0
        %475 = vmatprep.mubr.f32.mxu0 0.0
        %476 = vmatmul.mubr.f32.gmra.mrb[0].mxu0 %v407
        %v477 = vpop.f32.mrb[0].mxu0
        %v478 = vadd.f32 0.0, %v477
        %v479 = vpop.f32.mrb[0].mxu0
        %480 = vdwg.mxu0
        %vm481 = vcmask 64512
        %v482 = vsel %vm481, %v478, -inf
        %483 = vmax.xlane.f32.xlu0 %v482
        %v484 = vpop.xlane.xlu0 %483
        %v485 = vsub.f32 %v478, %v484
        %v486 = vmul.f32 %v485, 1.442695
        %v487 = vpow.pop %v486
        %v488 = vsel %vm481, %v487, 0.0
        %489 = vadd.xlane.f32.xlu0 %v488
        %v490 = vpop.xlane.xlu0 %489
        %v491 = vrcp.pop %v490
        %v492 = vmul.f32 %v487, %v491
        %493 = vst.msk [vmem:[%s219] sm:$0xff] %vm481, %v492
        %v495 = vsel %vm481, %v492, 0
        %497 = vmatprep.subr.mxu0 0.0
        %498 = vmatpush1.msra.mxu0 %v401
        %499 = vmatprep.subr.mxu0 0.0
        %500 = vmatpush1.msra.mxu0 0.0
        %501 = vmatprep.subr.mxu0 0.0
        %502 = vmatpush1.msra.mxu0 0.0
        %503 = vmatprep.subr.mxu0 0.0
        %504 = vmatpush1.msra.mxu0 0.0
        %505 = vmatprep.subr.mxu0 0.0
        %506 = vmatpush1.msra.mxu0 0.0
        %507 = vmatprep.subr.mxu0 0.0
        %508 = vmatpush1.msra.mxu0 0.0
        %509 = vmatprep.subr.mxu0 0.0
        %510 = vmatpush1.msra.mxu0 0.0
        %511 = vmatprep.subr.mxu0 0.0
        %512 = vmatpush1.msra.mxu0 0.0
        %513 = vmatprep.subr.mxu0 0.0
        %514 = vmatpush1.msra.mxu0 0.0
        %515 = vmatprep.subr.mxu0 0.0
        %516 = vmatpush1.msra.mxu0 0.0
        %517 = vmatprep.subr.mxu0 0.0
        %518 = vmatpush1.msra.mxu0 0.0
        %519 = vmatprep.subr.mxu0 0.0
        %520 = vmatpush1.msra.mxu0 0.0
        %521 = vmatprep.subr.mxu0 0.0
        %522 = vmatpush1.msra.mxu0 0.0
        %523 = vmatprep.subr.mxu0 0.0
        %524 = vmatpush1.msra.mxu0 0.0
        %525 = vmatprep.subr.mxu0 0.0
        %526 = vmatpush1.msra.mxu0 0.0
        %527 = vmatprep.subr.mxu0 0.0
        %528 = vmatpush1.msra.mxu0 0.0
        %529 = vmatprep.subr.mxu0 0.0
        %530 = vmatpush1.msra.mxu0 0.0
        %531 = vmatprep.subr.mxu0 0.0
        %532 = vmatpush1.msra.mxu0 0.0
        %533 = vmatprep.subr.mxu0 0.0
        %534 = vmatpush1.msra.mxu0 0.0
        %535 = vmatprep.subr.mxu0 0.0
        %536 = vmatpush1.msra.mxu0 0.0
        %537 = vmatprep.subr.mxu0 0.0
        %538 = vmatpush1.msra.mxu0 0.0
        %539 = vmatprep.subr.mxu0 0.0
        %540 = vmatpush1.msra.mxu0 0.0
        %541 = vmatprep.subr.mxu0 0.0
        %542 = vmatpush1.msra.mxu0 0.0
        %543 = vmatprep.subr.mxu0 0.0
        %544 = vmatpush1.msra.mxu0 0.0
        %545 = vmatprep.subr.mxu0 0.0
        %546 = vmatpush1.msra.mxu0 0.0
        %547 = vmatprep.subr.mxu0 0.0
        %548 = vmatpush1.msra.mxu0 0.0
        %549 = vmatprep.subr.mxu0 0.0
        %550 = vmatpush1.msra.mxu0 0.0
        %551 = vmatprep.subr.mxu0 0.0
        %552 = vmatpush1.msra.mxu0 0.0
        %553 = vmatprep.subr.mxu0 0.0
        %554 = vmatpush1.msra.mxu0 0.0
        %555 = vmatprep.subr.mxu0 0.0
        %556 = vmatpush1.msra.mxu0 0.0
        %557 = vmatprep.subr.mxu0 0.0
        %558 = vmatpush1.msra.mxu0 0.0
        %559 = vmatprep.subr.mxu0 0.0
        %560 = vmatpush1.msra.mxu0 0.0
        %561 = vmatprep.mubr.f32.mxu0 0.0
        %562 = vmatmul.mubr.f32.gmra.mrb[0].mxu0 %v495
        %v563 = vpop.f32.mrb[0].mxu0
        %v564 = vadd.f32 0.0, %v563
        %v565 = vpop.f32.mrb[0].mxu0
        %566 = vdwg.mxu0
        %567 = vst.msk [vmem:[#allocation2] sm:$0xff] %vm406, %v564
        %568 = vrot.lane.b32.xlu0 %v399, 112
        %v569 = vpop.permute.xlu0 %568
        %570 = vrot.lane.b32.xlu0 %v399, 48
        %v571 = vpop.permute.xlu0 %570
        %v572 = vsel %vm406, %v569, 0
        %v574 = vsel %vm406, %v571, 0
        %576 = vmatprep.subr.mxu0 0.0
        %577 = vmatpush1.xpose.msra.mxu0 %v574
        %578 = vmatprep.subr.mxu0 0.0
        %579 = vmatpush1.xpose.msra.mxu0 0.0
        %580 = vmatprep.subr.mxu0 0.0
        %581 = vmatpush1.xpose.msra.mxu0 0.0
        %582 = vmatprep.subr.mxu0 0.0
        %583 = vmatpush1.xpose.msra.mxu0 0.0
        %584 = vmatprep.subr.mxu0 0.0
        %585 = vmatpush1.xpose.msra.mxu0 0.0
        %586 = vmatprep.subr.mxu0 0.0
        %587 = vmatpush1.xpose.msra.mxu0 0.0
        %588 = vmatprep.subr.mxu0 0.0
        %589 = vmatpush1.xpose.msra.mxu0 0.0
        %590 = vmatprep.subr.mxu0 0.0
        %591 = vmatpush1.xpose.msra.mxu0 0.0
        %592 = vmatprep.subr.mxu0 0.0
        %593 = vmatpush1.xpose.msra.mxu0 0.0
        %594 = vmatprep.subr.mxu0 0.0
        %595 = vmatpush1.xpose.msra.mxu0 0.0
        %596 = vmatprep.subr.mxu0 0.0
        %597 = vmatpush1.xpose.msra.mxu0 0.0
        %598 = vmatprep.subr.mxu0 0.0
        %599 = vmatpush1.xpose.msra.mxu0 0.0
        %600 = vmatprep.subr.mxu0 0.0
        %601 = vmatpush1.xpose.msra.mxu0 0.0
        %602 = vmatprep.subr.mxu0 0.0
        %603 = vmatpush1.xpose.msra.mxu0 0.0
        %604 = vmatprep.subr.mxu0 0.0
        %605 = vmatpush1.xpose.msra.mxu0 0.0
        %606 = vmatprep.subr.mxu0 0.0
        %607 = vmatpush1.xpose.msra.mxu0 0.0
        %608 = vmatprep.subr.mxu0 0.0
        %609 = vmatpush1.xpose.msra.mxu0 0.0
        %610 = vmatprep.subr.mxu0 0.0
        %611 = vmatpush1.xpose.msra.mxu0 0.0
        %612 = vmatprep.subr.mxu0 0.0
        %613 = vmatpush1.xpose.msra.mxu0 0.0
        %614 = vmatprep.subr.mxu0 0.0
        %615 = vmatpush1.xpose.msra.mxu0 0.0
        %616 = vmatprep.subr.mxu0 0.0
        %617 = vmatpush1.xpose.msra.mxu0 0.0
        %618 = vmatprep.subr.mxu0 0.0
        %619 = vmatpush1.xpose.msra.mxu0 0.0
        %620 = vmatprep.subr.mxu0 0.0
        %621 = vmatpush1.xpose.msra.mxu0 0.0
        %622 = vmatprep.subr.mxu0 0.0
        %623 = vmatpush1.xpose.msra.mxu0 0.0
        %624 = vmatprep.subr.mxu0 0.0
        %625 = vmatpush1.xpose.msra.mxu0 0.0
        %626 = vmatprep.subr.mxu0 0.0
        %627 = vmatpush1.xpose.msra.mxu0 0.0
        %628 = vmatprep.subr.mxu0 0.0
        %629 = vmatpush1.xpose.msra.mxu0 0.0
        %630 = vmatprep.subr.mxu0 0.0
        %631 = vmatpush1.xpose.msra.mxu0 0.0
        %632 = vmatprep.subr.mxu0 0.0
        %633 = vmatpush1.xpose.msra.mxu0 0.0
        %634 = vmatprep.subr.mxu0 0.0
        %635 = vmatpush1.xpose.msra.mxu0 0.0
        %636 = vmatprep.subr.mxu0 0.0
        %637 = vmatpush1.xpose.msra.mxu0 0.0
        %638 = vmatprep.subr.mxu0 0.0
        %639 = vmatpush1.xpose.msra.mxu0 0.0
        %640 = vmatprep.mubr.f32.mxu0 0.0
        %641 = vmatmul.mubr.f32.gmra.mrb[0].mxu0 %v572
        %v642 = vpop.f32.mrb[0].mxu0
        %v643 = vadd.f32 0.0, %v642
        %v644 = vpop.f32.mrb[0].mxu0
        %645 = vdwg.mxu0
        %v646 = vsel %vm481, %v643, -inf
        %647 = vmax.xlane.f32.xlu0 %v646
        %v648 = vpop.xlane.xlu0 %647
        %v649 = vsub.f32 %v643, %v648
        %v650 = vmul.f32 %v649, 1.442695
        %v651 = vpow.pop %v650
        %v652 = vsel %vm481, %v651, 0.0
        %653 = vadd.xlane.f32.xlu0 %v652
        %v654 = vpop.xlane.xlu0 %653
        %v655 = vrcp.pop %v654
        %v656 = vmul.f32 %v651, %v655
        %s657 = scalar_lea.vmem %s219, 8 [#allocation3]
        %658 = vst.msk [vmem:[%s657] sm:$0xff] %vm481, %v656
        %660 = vrot.lane.b32.xlu0 %v401, 112
        %v661 = vpop.permute.xlu0 %660
        %v664 = vsel %vm481, %v656, 0
        %666 = vmatprep.subr.mxu0 0.0
        %667 = vmatpush1.msra.mxu0 %v661
        %668 = vmatprep.subr.mxu0 0.0
        %669 = vmatpush1.msra.mxu0 0.0
        %670 = vmatprep.subr.mxu0 0.0
        %671 = vmatpush1.msra.mxu0 0.0
        %672 = vmatprep.subr.mxu0 0.0
        %673 = vmatpush1.msra.mxu0 0.0
        %674 = vmatprep.subr.mxu0 0.0
        %675 = vmatpush1.msra.mxu0 0.0
        %676 = vmatprep.subr.mxu0 0.0
        %677 = vmatpush1.msra.mxu0 0.0
        %678 = vmatprep.subr.mxu0 0.0
        %679 = vmatpush1.msra.mxu0 0.0
        %680 = vmatprep.subr.mxu0 0.0
        %681 = vmatpush1.msra.mxu0 0.0
        %682 = vmatprep.subr.mxu0 0.0
        %683 = vmatpush1.msra.mxu0 0.0
        %684 = vmatprep.subr.mxu0 0.0
        %685 = vmatpush1.msra.mxu0 0.0
        %686 = vmatprep.subr.mxu0 0.0
        %687 = vmatpush1.msra.mxu0 0.0
        %688 = vmatprep.subr.mxu0 0.0
        %689 = vmatpush1.msra.mxu0 0.0
        %690 = vmatprep.subr.mxu0 0.0
        %691 = vmatpush1.msra.mxu0 0.0
        %692 = vmatprep.subr.mxu0 0.0
        %693 = vmatpush1.msra.mxu0 0.0
        %694 = vmatprep.subr.mxu0 0.0
        %695 = vmatpush1.msra.mxu0 0.0
        %696 = vmatprep.subr.mxu0 0.0
        %697 = vmatpush1.msra.mxu0 0.0
        %698 = vmatprep.subr.mxu0 0.0
        %699 = vmatpush1.msra.mxu0 0.0
        %700 = vmatprep.subr.mxu0 0.0
        %701 = vmatpush1.msra.mxu0 0.0
        %702 = vmatprep.subr.mxu0 0.0
        %703 = vmatpush1.msra.mxu0 0.0
        %704 = vmatprep.subr.mxu0 0.0
        %705 = vmatpush1.msra.mxu0 0.0
        %706 = vmatprep.subr.mxu0 0.0
        %707 = vmatpush1.msra.mxu0 0.0
        %708 = vmatprep.subr.mxu0 0.0
        %709 = vmatpush1.msra.mxu0 0.0
        %710 = vmatprep.subr.mxu0 0.0
        %711 = vmatpush1.msra.mxu0 0.0
        %712 = vmatprep.subr.mxu0 0.0
        %713 = vmatpush1.msra.mxu0 0.0
        %714 = vmatprep.subr.mxu0 0.0
        %715 = vmatpush1.msra.mxu0 0.0
        %716 = vmatprep.subr.mxu0 0.0
        %717 = vmatpush1.msra.mxu0 0.0
        %718 = vmatprep.subr.mxu0 0.0
        %719 = vmatpush1.msra.mxu0 0.0
        %720 = vmatprep.subr.mxu0 0.0
        %721 = vmatpush1.msra.mxu0 0.0
        %722 = vmatprep.subr.mxu0 0.0
        %723 = vmatpush1.msra.mxu0 0.0
        %724 = vmatprep.subr.mxu0 0.0
        %725 = vmatpush1.msra.mxu0 0.0
        %726 = vmatprep.subr.mxu0 0.0
        %727 = vmatpush1.msra.mxu0 0.0
        %728 = vmatprep.subr.mxu0 0.0
        %729 = vmatpush1.msra.mxu0 0.0
        %730 = vmatprep.mubr.f32.mxu0 0.0
        %731 = vmatmul.mubr.f32.gmra.mrb[0].mxu0 %v664
        %v732 = vpop.f32.mrb[0].mxu0
        %v733 = vadd.f32 0.0, %v732
        %v734 = vpop.f32.mrb[0].mxu0
        %735 = vdwg.mxu0
        %737 = vrot.lane.b32.xlu0 %v733, 16
        %v738 = vpop.permute.xlu0 %737
        %vm740 = vcmask 261248
        %741 = vst.msk [vmem:[#allocation2] sm:$0xff] %vm740, %v738
        %742 = vrot.lane.b32.xlu0 %v399, 96
        %v743 = vpop.permute.xlu0 %742
        %744 = vrot.lane.b32.xlu0 %v399, 32
        %v745 = vpop.permute.xlu0 %744
        %v746 = vsel %vm406, %v743, 0
        %v748 = vsel %vm406, %v745, 0
        %750 = vmatprep.subr.mxu0 0.0
        %751 = vmatpush1.xpose.msra.mxu0 %v748
        %752 = vmatprep.subr.mxu0 0.0
        %753 = vmatpush1.xpose.msra.mxu0 0.0
        %754 = vmatprep.subr.mxu0 0.0
        %755 = vmatpush1.xpose.msra.mxu0 0.0
        %756 = vmatprep.subr.mxu0 0.0
        %757 = vmatpush1.xpose.msra.mxu0 0.0
        %758 = vmatprep.subr.mxu0 0.0
        %759 = vmatpush1.xpose.msra.mxu0 0.0
        %760 = vmatprep.subr.mxu0 0.0
        %761 = vmatpush1.xpose.msra.mxu0 0.0
        %762 = vmatprep.subr.mxu0 0.0
        %763 = vmatpush1.xpose.msra.mxu0 0.0
        %764 = vmatprep.subr.mxu0 0.0
        %765 = vmatpush1.xpose.msra.mxu0 0.0
        %766 = vmatprep.subr.mxu0 0.0
        %767 = vmatpush1.xpose.msra.mxu0 0.0
        %768 = vmatprep.subr.mxu0 0.0
        %769 = vmatpush1.xpose.msra.mxu0 0.0
        %770 = vmatprep.subr.mxu0 0.0
        %771 = vmatpush1.xpose.msra.mxu0 0.0
        %772 = vmatprep.subr.mxu0 0.0
        %773 = vmatpush1.xpose.msra.mxu0 0.0
        %774 = vmatprep.subr.mxu0 0.0
        %775 = vmatpush1.xpose.msra.mxu0 0.0
        %776 = vmatprep.subr.mxu0 0.0
        %777 = vmatpush1.xpose.msra.mxu0 0.0
        %778 = vmatprep.subr.mxu0 0.0
        %779 = vmatpush1.xpose.msra.mxu0 0.0
        %780 = vmatprep.subr.mxu0 0.0
        %781 = vmatpush1.xpose.msra.mxu0 0.0
        %782 = vmatprep.subr.mxu0 0.0
        %783 = vmatpush1.xpose.msra.mxu0 0.0
        %784 = vmatprep.subr.mxu0 0.0
        %785 = vmatpush1.xpose.msra.mxu0 0.0
        %786 = vmatprep.subr.mxu0 0.0
        %787 = vmatpush1.xpose.msra.mxu0 0.0
        %788 = vmatprep.subr.mxu0 0.0
        %789 = vmatpush1.xpose.msra.mxu0 0.0
        %790 = vmatprep.subr.mxu0 0.0
        %791 = vmatpush1.xpose.msra.mxu0 0.0
        %792 = vmatprep.subr.mxu0 0.0
        %793 = vmatpush1.xpose.msra.mxu0 0.0
        %794 = vmatprep.subr.mxu0 0.0
        %795 = vmatpush1.xpose.msra.mxu0 0.0
        %796 = vmatprep.subr.mxu0 0.0
        %797 = vmatpush1.xpose.msra.mxu0 0.0
        %798 = vmatprep.subr.mxu0 0.0
        %799 = vmatpush1.xpose.msra.mxu0 0.0
        %800 = vmatprep.subr.mxu0 0.0
        %801 = vmatpush1.xpose.msra.mxu0 0.0
        %802 = vmatprep.subr.mxu0 0.0
        %803 = vmatpush1.xpose.msra.mxu0 0.0
        %804 = vmatprep.subr.mxu0 0.0
        %805 = vmatpush1.xpose.msra.mxu0 0.0
        %806 = vmatprep.subr.mxu0 0.0
        %807 = vmatpush1.xpose.msra.mxu0 0.0
        %808 = vmatprep.subr.mxu0 0.0
        %809 = vmatpush1.xpose.msra.mxu0 0.0
        %810 = vmatprep.subr.mxu0 0.0
        %811 = vmatpush1.xpose.msra.mxu0 0.0
        %812 = vmatprep.subr.mxu0 0.0
        %813 = vmatpush1.xpose.msra.mxu0 0.0
        %814 = vmatprep.mubr.f32.mxu0 0.0
        %815 = vmatmul.mubr.f32.gmra.mrb[0].mxu0 %v746
        %v816 = vpop.f32.mrb[0].mxu0
        %v817 = vadd.f32 0.0, %v816
        %v818 = vpop.f32.mrb[0].mxu0
        %819 = vdwg.mxu0
        %v820 = vsel %vm481, %v817, -inf
        %821 = vmax.xlane.f32.xlu0 %v820
        %v822 = vpop.xlane.xlu0 %821
        %v823 = vsub.f32 %v817, %v822
        %v824 = vmul.f32 %v823, 1.442695
        %v825 = vpow.pop %v824
        %v826 = vsel %vm481, %v825, 0.0
        %827 = vadd.xlane.f32.xlu0 %v826
        %v828 = vpop.xlane.xlu0 %827
        %v829 = vrcp.pop %v828
        %v830 = vmul.f32 %v825, %v829
        %s831 = scalar_lea.vmem %s219, 16 [#allocation3]
        %832 = vst.msk [vmem:[%s831] sm:$0xff] %vm481, %v830
        %833 = vrot.lane.b32.xlu0 %v401, 96
        %v834 = vpop.permute.xlu0 %833
        %v837 = vsel %vm481, %v830, 0
        %839 = vmatprep.subr.mxu0 0.0
        %840 = vmatpush1.msra.mxu0 %v834
        %841 = vmatprep.subr.mxu0 0.0
        %842 = vmatpush1.msra.mxu0 0.0
        %843 = vmatprep.subr.mxu0 0.0
        %844 = vmatpush1.msra.mxu0 0.0
        %845 = vmatprep.subr.mxu0 0.0
        %846 = vmatpush1.msra.mxu0 0.0
        %847 = vmatprep.subr.mxu0 0.0
        %848 = vmatpush1.msra.mxu0 0.0
        %849 = vmatprep.subr.mxu0 0.0
        %850 = vmatpush1.msra.mxu0 0.0
        %851 = vmatprep.subr.mxu0 0.0
        %852 = vmatpush1.msra.mxu0 0.0
        %853 = vmatprep.subr.mxu0 0.0
        %854 = vmatpush1.msra.mxu0 0.0
        %855 = vmatprep.subr.mxu0 0.0
        %856 = vmatpush1.msra.mxu0 0.0
        %857 = vmatprep.subr.mxu0 0.0
        %858 = vmatpush1.msra.mxu0 0.0
        %859 = vmatprep.subr.mxu0 0.0
        %860 = vmatpush1.msra.mxu0 0.0
        %861 = vmatprep.subr.mxu0 0.0
        %862 = vmatpush1.msra.mxu0 0.0
        %863 = vmatprep.subr.mxu0 0.0
        %864 = vmatpush1.msra.mxu0 0.0
        %865 = vmatprep.subr.mxu0 0.0
        %866 = vmatpush1.msra.mxu0 0.0
        %867 = vmatprep.subr.mxu0 0.0
        %868 = vmatpush1.msra.mxu0 0.0
        %869 = vmatprep.subr.mxu0 0.0
        %870 = vmatpush1.msra.mxu0 0.0
        %871 = vmatprep.subr.mxu0 0.0
        %872 = vmatpush1.msra.mxu0 0.0
        %873 = vmatprep.subr.mxu0 0.0
        %874 = vmatpush1.msra.mxu0 0.0
        %875 = vmatprep.subr.mxu0 0.0
        %876 = vmatpush1.msra.mxu0 0.0
        %877 = vmatprep.subr.mxu0 0.0
        %878 = vmatpush1.msra.mxu0 0.0
        %879 = vmatprep.subr.mxu0 0.0
        %880 = vmatpush1.msra.mxu0 0.0
        %881 = vmatprep.subr.mxu0 0.0
        %882 = vmatpush1.msra.mxu0 0.0
        %883 = vmatprep.subr.mxu0 0.0
        %884 = vmatpush1.msra.mxu0 0.0
        %885 = vmatprep.subr.mxu0 0.0
        %886 = vmatpush1.msra.mxu0 0.0
        %887 = vmatprep.subr.mxu0 0.0
        %888 = vmatpush1.msra.mxu0 0.0
        %889 = vmatprep.subr.mxu0 0.0
        %890 = vmatpush1.msra.mxu0 0.0
        %891 = vmatprep.subr.mxu0 0.0
        %892 = vmatpush1.msra.mxu0 0.0
        %893 = vmatprep.subr.mxu0 0.0
        %894 = vmatpush1.msra.mxu0 0.0
        %895 = vmatprep.subr.mxu0 0.0
        %896 = vmatpush1.msra.mxu0 0.0
        %897 = vmatprep.subr.mxu0 0.0
        %898 = vmatpush1.msra.mxu0 0.0
        %899 = vmatprep.subr.mxu0 0.0
        %900 = vmatpush1.msra.mxu0 0.0
        %901 = vmatprep.subr.mxu0 0.0
        %902 = vmatpush1.msra.mxu0 0.0
        %903 = vmatprep.mubr.f32.mxu0 0.0
        %904 = vmatmul.mubr.f32.gmra.mrb[0].mxu0 %v837
        %v905 = vpop.f32.mrb[0].mxu0
        %v906 = vadd.f32 0.0, %v905
        %v907 = vpop.f32.mrb[0].mxu0
        %908 = vdwg.mxu0
        %910 = vrot.lane.b32.xlu0 %v906, 32
        %v911 = vpop.permute.xlu0 %910
        %vm913 = vcmask 392448
        %914 = vst.msk [vmem:[#allocation2] sm:$0xff] %vm913, %v911
        %915 = vrot.lane.b32.xlu0 %v399, 80
        %v916 = vpop.permute.xlu0 %915
        %917 = vrot.lane.b32.xlu0 %v399, 16
        %v918 = vpop.permute.xlu0 %917
        %v919 = vsel %vm406, %v916, 0
        %v921 = vsel %vm406, %v918, 0
        %923 = vmatprep.subr.mxu0 0.0
        %924 = vmatpush1.xpose.msra.mxu0 %v921
        %925 = vmatprep.subr.mxu0 0.0
        %926 = vmatpush1.xpose.msra.mxu0 0.0
        %927 = vmatprep.subr.mxu0 0.0
        %928 = vmatpush1.xpose.msra.mxu0 0.0
        %929 = vmatprep.subr.mxu0 0.0
        %930 = vmatpush1.xpose.msra.mxu0 0.0
        %931 = vmatprep.subr.mxu0 0.0
        %932 = vmatpush1.xpose.msra.mxu0 0.0
        %933 = vmatprep.subr.mxu0 0.0
        %934 = vmatpush1.xpose.msra.mxu0 0.0
        %935 = vmatprep.subr.mxu0 0.0
        %936 = vmatpush1.xpose.msra.mxu0 0.0
        %937 = vmatprep.subr.mxu0 0.0
        %938 = vmatpush1.xpose.msra.mxu0 0.0
        %939 = vmatprep.subr.mxu0 0.0
        %940 = vmatpush1.xpose.msra.mxu0 0.0
        %941 = vmatprep.subr.mxu0 0.0
        %942 = vmatpush1.xpose.msra.mxu0 0.0
        %943 = vmatprep.subr.mxu0 0.0
        %944 = vmatpush1.xpose.msra.mxu0 0.0
        %945 = vmatprep.subr.mxu0 0.0
        %946 = vmatpush1.xpose.msra.mxu0 0.0
        %947 = vmatprep.subr.mxu0 0.0
        %948 = vmatpush1.xpose.msra.mxu0 0.0
        %949 = vmatprep.subr.mxu0 0.0
        %950 = vmatpush1.xpose.msra.mxu0 0.0
        %951 = vmatprep.subr.mxu0 0.0
        %952 = vmatpush1.xpose.msra.mxu0 0.0
        %953 = vmatprep.subr.mxu0 0.0
        %954 = vmatpush1.xpose.msra.mxu0 0.0
        %955 = vmatprep.subr.mxu0 0.0
        %956 = vmatpush1.xpose.msra.mxu0 0.0
        %957 = vmatprep.subr.mxu0 0.0
        %958 = vmatpush1.xpose.msra.mxu0 0.0
        %959 = vmatprep.subr.mxu0 0.0
        %960 = vmatpush1.xpose.msra.mxu0 0.0
        %961 = vmatprep.subr.mxu0 0.0
        %962 = vmatpush1.xpose.msra.mxu0 0.0
        %963 = vmatprep.subr.mxu0 0.0
        %964 = vmatpush1.xpose.msra.mxu0 0.0
        %965 = vmatprep.subr.mxu0 0.0
        %966 = vmatpush1.xpose.msra.mxu0 0.0
        %967 = vmatprep.subr.mxu0 0.0
        %968 = vmatpush1.xpose.msra.mxu0 0.0
        %969 = vmatprep.subr.mxu0 0.0
        %970 = vmatpush1.xpose.msra.mxu0 0.0
        %971 = vmatprep.subr.mxu0 0.0
        %972 = vmatpush1.xpose.msra.mxu0 0.0
        %973 = vmatprep.subr.mxu0 0.0
        %974 = vmatpush1.xpose.msra.mxu0 0.0
        %975 = vmatprep.subr.mxu0 0.0
        %976 = vmatpush1.xpose.msra.mxu0 0.0
        %977 = vmatprep.subr.mxu0 0.0
        %978 = vmatpush1.xpose.msra.mxu0 0.0
        %979 = vmatprep.subr.mxu0 0.0
        %980 = vmatpush1.xpose.msra.mxu0 0.0
        %981 = vmatprep.subr.mxu0 0.0
        %982 = vmatpush1.xpose.msra.mxu0 0.0
        %983 = vmatprep.subr.mxu0 0.0
        %984 = vmatpush1.xpose.msra.mxu0 0.0
        %985 = vmatprep.subr.mxu0 0.0
        %986 = vmatpush1.xpose.msra.mxu0 0.0
        %987 = vmatprep.mubr.f32.mxu0 0.0
        %988 = vmatmul.mubr.f32.gmra.mrb[0].mxu0 %v919
        %v989 = vpop.f32.mrb[0].mxu0
        %v990 = vadd.f32 0.0, %v989
        %v991 = vpop.f32.mrb[0].mxu0
        %992 = vdwg.mxu0
        %v993 = vsel %vm481, %v990, -inf
        %994 = vmax.xlane.f32.xlu0 %v993
        %v995 = vpop.xlane.xlu0 %994
        %v996 = vsub.f32 %v990, %v995
        %v997 = vmul.f32 %v996, 1.442695
        %v998 = vpow.pop %v997
        %v999 = vsel %vm481, %v998, 0.0
        %1000 = vadd.xlane.f32.xlu0 %v999
        %v1001 = vpop.xlane.xlu0 %1000
        %v1002 = vrcp.pop %v1001
        %v1003 = vmul.f32 %v998, %v1002
        %s1004 = scalar_lea.vmem %s219, 24 [#allocation3]
        %1005 = vst.msk [vmem:[%s1004] sm:$0xff] %vm481, %v1003
        %1006 = vrot.lane.b32.xlu0 %v401, 80
        %v1007 = vpop.permute.xlu0 %1006
        %v1010 = vsel %vm481, %v1003, 0
        %1012 = vmatprep.subr.mxu0 0.0
        %1013 = vmatpush1.msra.mxu0 %v1007
        %1014 = vmatprep.subr.mxu0 0.0
        %1015 = vmatpush1.msra.mxu0 0.0
        %1016 = vmatprep.subr.mxu0 0.0
        %1017 = vmatpush1.msra.mxu0 0.0
        %1018 = vmatprep.subr.mxu0 0.0
        %1019 = vmatpush1.msra.mxu0 0.0
        %1020 = vmatprep.subr.mxu0 0.0
        %1021 = vmatpush1.msra.mxu0 0.0
        %1022 = vmatprep.subr.mxu0 0.0
        %1023 = vmatpush1.msra.mxu0 0.0
        %1024 = vmatprep.subr.mxu0 0.0
        %1025 = vmatpush1.msra.mxu0 0.0
        %1026 = vmatprep.subr.mxu0 0.0
        %1027 = vmatpush1.msra.mxu0 0.0
        %1028 = vmatprep.subr.mxu0 0.0
        %1029 = vmatpush1.msra.mxu0 0.0
        %1030 = vmatprep.subr.mxu0 0.0
        %1031 = vmatpush1.msra.mxu0 0.0
        %1032 = vmatprep.subr.mxu0 0.0
        %1033 = vmatpush1.msra.mxu0 0.0
        %1034 = vmatprep.subr.mxu0 0.0
        %1035 = vmatpush1.msra.mxu0 0.0
        %1036 = vmatprep.subr.mxu0 0.0
        %1037 = vmatpush1.msra.mxu0 0.0
        %1038 = vmatprep.subr.mxu0 0.0
        %1039 = vmatpush1.msra.mxu0 0.0
        %1040 = vmatprep.subr.mxu0 0.0
        %1041 = vmatpush1.msra.mxu0 0.0
        %1042 = vmatprep.subr.mxu0 0.0
        %1043 = vmatpush1.msra.mxu0 0.0
        %1044 = vmatprep.subr.mxu0 0.0
        %1045 = vmatpush1.msra.mxu0 0.0
        %1046 = vmatprep.subr.mxu0 0.0
        %1047 = vmatpush1.msra.mxu0 0.0
        %1048 = vmatprep.subr.mxu0 0.0
        %1049 = vmatpush1.msra.mxu0 0.0
        %1050 = vmatprep.subr.mxu0 0.0
        %1051 = vmatpush1.msra.mxu0 0.0
        %1052 = vmatprep.subr.mxu0 0.0
        %1053 = vmatpush1.msra.mxu0 0.0
        %1054 = vmatprep.subr.mxu0 0.0
        %1055 = vmatpush1.msra.mxu0 0.0
        %1056 = vmatprep.subr.mxu0 0.0
        %1057 = vmatpush1.msra.mxu0 0.0
        %1058 = vmatprep.subr.mxu0 0.0
        %1059 = vmatpush1.msra.mxu0 0.0
        %1060 = vmatprep.subr.mxu0 0.0
        %1061 = vmatpush1.msra.mxu0 0.0
        %1062 = vmatprep.subr.mxu0 0.0
        %1063 = vmatpush1.msra.mxu0 0.0
        %1064 = vmatprep.subr.mxu0 0.0
        %1065 = vmatpush1.msra.mxu0 0.0
        %1066 = vmatprep.subr.mxu0 0.0
        %1067 = vmatpush1.msra.mxu0 0.0
        %1068 = vmatprep.subr.mxu0 0.0
        %1069 = vmatpush1.msra.mxu0 0.0
        %1070 = vmatprep.subr.mxu0 0.0
        %1071 = vmatpush1.msra.mxu0 0.0
        %1072 = vmatprep.subr.mxu0 0.0
        %1073 = vmatpush1.msra.mxu0 0.0
        %1074 = vmatprep.subr.mxu0 0.0
        %1075 = vmatpush1.msra.mxu0 0.0
        %1076 = vmatprep.mubr.f32.mxu0 0.0
        %1077 = vmatmul.mubr.f32.gmra.mrb[0].mxu0 %v1010
        %v1078 = vpop.f32.mrb[0].mxu0
        %v1079 = vadd.f32 0.0, %v1078
        %v1080 = vpop.f32.mrb[0].mxu0
        %1081 = vdwg.mxu0
        %1083 = vrot.lane.b32.xlu0 %v1079, 48
        %v1084 = vpop.permute.xlu0 %1083
        %vm1086 = vcmask 523648
        %1087 = vst.msk [vmem:[#allocation2] sm:$0xff] %vm1086, %v1084
        %v1088 = vld [vmem:[#allocation2] sm:$0xff]
        %v1089 = vld [vmem:[%s2] sm:$0xff]
        %v1090 = vld [vmem:[%s2 + $0x8] sm:$0xff]
        %v1091 = vld [vmem:[%s2 + $0x10] sm:$0xff]
        %v1092 = vld [vmem:[%s2 + $0x18] sm:$0xff]
        %v1093 = vld [vmem:[%s3] sm:$0x1]
        %v1095 = vlaneseq
        %v1096 = vshrl.u32 %v1095, 7
        %v1097 = vsub.s32 0, %v1096
        %v1098 = vrot.slane %v1093, %v1097
        %vm1100 = vcmask 523264
        %v1102 = vsel %vm1100, %v1088, 0
        %v1105 = vsel %vm1100, %v1089, 0
        %v1108 = vsel %vm1100, %v1090, 0
        %v1111 = vsel %vm1100, %v1091, 0
        %v1114 = vsel %vm1100, %v1092, 0
        %1116 = vmatprep.subr.mxu0 0.0
        %1117 = vmatpush1.xpose.msra.mxu0 %v1105
        %1118 = vmatprep.subr.mxu0 0.0
        %1119 = vmatpush1.xpose.msra.mxu0 %v1108
        %1120 = vmatprep.subr.mxu0 0.0
        %1121 = vmatpush1.xpose.msra.mxu0 %v1111
        %1122 = vmatprep.subr.mxu0 0.0
        %1123 = vmatpush1.xpose.msra.mxu0 %v1114
        %1124 = vmatprep.subr.mxu0 0.0
        %1125 = vmatpush1.xpose.msra.mxu0 0.0
        %1126 = vmatprep.subr.mxu0 0.0
        %1127 = vmatpush1.xpose.msra.mxu0 0.0
        %1128 = vmatprep.subr.mxu0 0.0
        %1129 = vmatpush1.xpose.msra.mxu0 0.0
        %1130 = vmatprep.subr.mxu0 0.0
        %1131 = vmatpush1.xpose.msra.mxu0 0.0
        %1132 = vmatprep.subr.mxu0 0.0
        %1133 = vmatpush1.xpose.msra.mxu0 0.0
        %1134 = vmatprep.subr.mxu0 0.0
        %1135 = vmatpush1.xpose.msra.mxu0 0.0
        %1136 = vmatprep.subr.mxu0 0.0
        %1137 = vmatpush1.xpose.msra.mxu0 0.0
        %1138 = vmatprep.subr.mxu0 0.0
        %1139 = vmatpush1.xpose.msra.mxu0 0.0
        %1140 = vmatprep.subr.mxu0 0.0
        %1141 = vmatpush1.xpose.msra.mxu0 0.0
        %1142 = vmatprep.subr.mxu0 0.0
        %1143 = vmatpush1.xpose.msra.mxu0 0.0
        %1144 = vmatprep.subr.mxu0 0.0
        %1145 = vmatpush1.xpose.msra.mxu0 0.0
        %1146 = vmatprep.subr.mxu0 0.0
        %1147 = vmatpush1.xpose.msra.mxu0 0.0
        %1148 = vmatprep.subr.mxu0 0.0
        %1149 = vmatpush1.xpose.msra.mxu0 0.0
        %1150 = vmatprep.subr.mxu0 0.0
        %1151 = vmatpush1.xpose.msra.mxu0 0.0
        %1152 = vmatprep.subr.mxu0 0.0
        %1153 = vmatpush1.xpose.msra.mxu0 0.0
        %1154 = vmatprep.subr.mxu0 0.0
        %1155 = vmatpush1.xpose.msra.mxu0 0.0
        %1156 = vmatprep.subr.mxu0 0.0
        %1157 = vmatpush1.xpose.msra.mxu0 0.0
        %1158 = vmatprep.subr.mxu0 0.0
        %1159 = vmatpush1.xpose.msra.mxu0 0.0
        %1160 = vmatprep.subr.mxu0 0.0
        %1161 = vmatpush1.xpose.msra.mxu0 0.0
        %1162 = vmatprep.subr.mxu0 0.0
        %1163 = vmatpush1.xpose.msra.mxu0 0.0
        %1164 = vmatprep.subr.mxu0 0.0
        %1165 = vmatpush1.xpose.msra.mxu0 0.0
        %1166 = vmatprep.subr.mxu0 0.0
        %1167 = vmatpush1.xpose.msra.mxu0 0.0
        %1168 = vmatprep.subr.mxu0 0.0
        %1169 = vmatpush1.xpose.msra.mxu0 0.0
        %1170 = vmatprep.subr.mxu0 0.0
        %1171 = vmatpush1.xpose.msra.mxu0 0.0
        %1172 = vmatprep.subr.mxu0 0.0
        %1173 = vmatpush1.xpose.msra.mxu0 0.0
        %1174 = vmatprep.subr.mxu0 0.0
        %1175 = vmatpush1.xpose.msra.mxu0 0.0
        %1176 = vmatprep.subr.mxu0 0.0
        %1177 = vmatpush1.xpose.msra.mxu0 0.0
        %1178 = vmatprep.subr.mxu0 0.0
        %1179 = vmatpush1.xpose.msra.mxu0 0.0
        %1180 = vmatprep.mubr.f32.mxu0 0.0
        %1181 = vmatmul.mubr.f32.gmra.mrb[0].mxu0 %v1102
        %v1182 = vpop.f32.mrb[0].mxu0
        %v1183 = vadd.f32 %v1098, %v1182
        %v1184 = vpop.f32.mrb[0].mxu0
        %1185 = vdwg.mxu0
        %1186 = vst.msk [vmem:[%s226] sm:$0xff] %vm256, %v1183
        %s1187 = sand.u32 %s120, 1
        %s1188 = scalar_lea.sflag [#allocation4], %s1187
        %s1189 = sand.u32 %s120, 1
        %s1190 = smul.addr %s1189, 32
        %s1191 = scalar_lea.vmem [#allocation3], %s1190
        %s1192 = sand.u32 %s146, 1
        %s1193 = scalar_lea.sflag [#allocation6], %s1192
        %s1194 = sand.u32 %s146, 1
        %s1195 = smul.addr %s1194, 8
        %s1196 = scalar_lea.vmem [#allocation5], %s1195
        // Predicated region
        $region37: #{tpu_custom_call.1} parent=35 // pred_check
          %p1197 = pneg %p130
        $region38: #{tpu_custom_call.1} parent=35 // pred_check_branch
          %1199 = sbr.rel (%p1197) target = $region40
        $region39: #{tpu_custom_call.1} parent=35 // pred_region
          %s1201 = ssub.s32 512, 512
          %1202 = vsyncadd %s1188, %s1201
          %s1203 = smul.addr %s23, 4
          %s1204 = smul.addr %s1203, 128
          %s1205 = scalar_lea.hbm %s4, %s1204
          %s1206 = sshll.u32 %s1191, 4
          %s1207 = int_to_ptr.vmem [resolvable:$true] %s1206
          %1212 = dma.vmem_to_hbm [thread:$0]  %s1207, 512, %s1205, %s1188, 128, 128, 8
        $region40: #{tpu_custom_call.1} parent=35 // pred_fallthru
          _
        // Predicated region
        $region41: #{tpu_custom_call.1} parent=35 // pred_check
          %p1213 = pneg %p156
        $region42: #{tpu_custom_call.1} parent=35 // pred_check_branch
          %1215 = sbr.rel (%p1213) target = $region44
        $region43: #{tpu_custom_call.1} parent=35 // pred_region
          %s1217 = ssub.s32 128, 128
          %1218 = vsyncadd %s1193, %s1217
          %s1219 = smul.addr %s23, 128
          %s1220 = scalar_lea.hbm %s5, %s1219
          %s1222 = sshll.u32 %s1196, 4
          %s1223 = int_to_ptr.vmem [resolvable:$true] %s1222
          %1225 = dma.vmem_to_hbm [thread:$0]  %s1223, 128, %s1220, %s1193
        $region44: #{tpu_custom_call.1} parent=35 // pred_fallthru
          _
      $region36: #{tpu_custom_call.1} parent=5 // pred_fallthru
        _
      %p1226 = scmp.le.s32.totalorder 2, %s18
      // Predicated region
      $region45: #{tpu_custom_call.1} parent=5 // pred_check
        %p1227 = pneg %p1226
      $region46: #{tpu_custom_call.1} parent=5 // pred_check_branch
        %1229 = sbr.rel (%p1227) target = $region48
      $region47: #{tpu_custom_call.1} parent=5 // pred_region
        %s1230 = ssub.s32 %s18, 2
        // Predicated region
        $region49: #{tpu_custom_call.1} parent=47 // pred_check
          %p1231 = pneg %p136
        $region50: #{tpu_custom_call.1} parent=47 // pred_check_branch
          %1233 = sbr.rel (%p1231) target = $region52
        $region51: #{tpu_custom_call.1} parent=47 // pred_region
          %s1234 = sand.u32 %s121, 1
          %s1235 = scalar_lea.sflag [#allocation4], %s1234
          %s1236 = sand.u32 %s121, 1
          %s1237 = smul.addr %s1236, 32
          %s1238 = scalar_lea.vmem [#allocation3], %s1237
          %1239 = dma.done %s1235, 512
        $region52: #{tpu_custom_call.1} parent=47 // pred_fallthru
          _
        // Predicated region
        $region53: #{tpu_custom_call.1} parent=47 // pred_check
          %p1240 = pneg %p162
        $region54: #{tpu_custom_call.1} parent=47 // pred_check_branch
          %1242 = sbr.rel (%p1240) target = $region56
        $region55: #{tpu_custom_call.1} parent=47 // pred_region
          %s1243 = sand.u32 %s147, 1
          %s1244 = scalar_lea.sflag [#allocation6], %s1243
          %s1245 = sand.u32 %s147, 1
          %s1246 = smul.addr %s1245, 8
          %s1247 = scalar_lea.vmem [#allocation5], %s1246
          %1248 = dma.done %s1244, 128
        $region56: #{tpu_custom_call.1} parent=47 // pred_fallthru
          _
      $region48: #{tpu_custom_call.1} parent=5 // pred_fallthru
        _
    $region6: #{tpu_custom_call.1} parent=1 // loop_footer
      %s22 = sadd.s32 1, %s18
    $region7: #{tpu_custom_call.1} parent=1 // loop_footer_branch
      %17 = sbr.rel target = $region3
    $region8: #{tpu_custom_call.1} parent=1 // loop_exit
      _
    %1249 = vsyncpa [#allocation4], 1
    %s1250 = scalar_lea.sflag [#allocation4], 1
    %1251 = vsyncpa %s1250, 1
    %1252 = vsyncpa [#allocation6], 1
    %s1253 = scalar_lea.sflag [#allocation6], 1
    %1254 = vsyncpa %s1253, 1

</llo_original>
